<compile_context>
chip_gen: v7x
topology: tpu7x:2x2x1
jax: 0.10.0
libtpu: 0.0.40
codegen_flags: <defaults>
</compile_context>

<pallas_src>
import jax
import jax.numpy as jnp
from jax.experimental import pallas as pl
from jax.experimental.pallas import tpu as pltpu


def _round_up(x, m):
    return ((x + m - 1) // m) * m


def _dqn_kernel(state_ref, cb_ref, cbt_ref,
                w1_ref, b1_ref, w2_ref, b2_ref, w3_ref, b3_ref,
                out_ref):
    state = state_ref[...]                     # (TB, D) f32
    cb = cb_ref[...]                           # (K, D)  f32
    cbt = cbt_ref[...]                         # (D, K)  f32 (pre-transposed)

    K = cb.shape[0]
    A = w3_ref.shape[1]
    W_PAD = out_ref.shape[1]

    # --- QuantizerFunction: soft attention over the codebook -----------------
    # logits = state @ cb^T, fed to the MXU in canonical (M,K)@(K,N) form via
    # the host-side pre-transposed codebook.
    logits = jnp.dot(state, cbt, preferred_element_type=jnp.float32)   # (TB, K)

    m = jnp.max(logits, axis=-1, keepdims=True)
    e = jnp.exp(logits - m)
    s = jnp.sum(e, axis=-1, keepdims=True)
    att = e / s                                 # exact divide; (TB, K) is tiny

    quant = jnp.dot(att, cb, preferred_element_type=jnp.float32)       # (TB, D)

    diff = quant - state
    row_sq = jnp.sum(diff * diff, axis=-1, keepdims=True)              # (TB, 1)

    # --- MLP head: fc1 -> relu -> fc2 -> relu -> fc3 --------------------------
    x = jnp.dot(quant, w1_ref[...], preferred_element_type=jnp.float32) + b1_ref[...]
    x = jnp.maximum(x, 0.0)
    x = jnp.dot(x, w2_ref[...], preferred_element_type=jnp.float32) + b2_ref[...]
    x = jnp.maximum(x, 0.0)
    actions = jnp.dot(x, w3_ref[...], preferred_element_type=jnp.float32) + b3_ref[...]

    # Single lane-dense output slab: [att | actions | row_sq_err | zero pad]
    # assembled once in registers, stored with one unmasked full-width vst.
    pad = jnp.zeros((state.shape[0], W_PAD - (K + A + 1)), jnp.float32)
    out_ref[...] = jnp.concatenate([att, actions, row_sq, pad], axis=-1)


def _choose_tb(B, block_b):
    """Pick a batch tile: multiple of 8, <= block_b, and >= 2 tiles for
    mid/large batches so the batch axis can shard across v7x's 2 TCs."""
    if B < 128:
        return _round_up(B, 8)
    half = _round_up((_round_up(B, 8) + 1) // 2, 8)
    return min(half, block_b)


def deep_q_forward(state, codebook, w1, b1, w2, b2, w3, b3, *, block_b=1024):
    """Returns (actions, CBloss, att_scores) matching DeepQNetwork_Q.forward."""
    B, D = state.shape
    K = codebook.shape[0]
    F1 = w1.shape[1]
    F2 = w2.shape[1]
    A = w3.shape[1]
    W = K + A + 1                                  # logical slab width
    W_PAD = _round_up(W, 128)                      # lane-dense output slab

    TB = _choose_tb(B, block_b)
    Bp = _round_up(B, TB)
    if Bp != B:
        state = jnp.pad(state, ((0, Bp - B), (0, 0)))
    grid = (Bp // TB,)

    codebook_t = jnp.transpose(codebook)           # (D, K) resident, canonical MXU feed

    resident = lambda i: (0, 0)                    # weights / codebook stay put

    flops = 2 * Bp * (D * K + K * D + D * F1 + F1 * F2 + F2 * A)
    transcendentals = Bp * K                       # exp
    bytes_accessed = 4 * (Bp * D + 2 * K * D + D * F1 + F1 + F1 * F2 + F2
                          + F2 * A + A + Bp * W_PAD)

    out = pl.pallas_call(
        _dqn_kernel,
        out_shape=jax.ShapeDtypeStruct((Bp, W_PAD), jnp.float32),
        grid=grid,
        in_specs=[
            pl.BlockSpec((TB, D), lambda i: (i, 0)),   # state (batch-blocked)
            pl.BlockSpec((K, D), resident),            # codebook (K, D)
            pl.BlockSpec((D, K), resident),            # codebook^T (D, K)
            pl.BlockSpec((D, F1), resident),           # w1
            pl.BlockSpec((1, F1), resident),           # b1
            pl.BlockSpec((F1, F2), resident),          # w2
            pl.BlockSpec((1, F2), resident),           # b2
            pl.BlockSpec((F2, A), resident),           # w3
            pl.BlockSpec((1, A), resident),            # b3
        ],
        out_specs=pl.BlockSpec((TB, W_PAD), lambda i: (i, 0)),
        compiler_params=pltpu.CompilerParams(
            dimension_semantics=("parallel",),
            vmem_limit_bytes=32 * 1024 * 1024),
        cost_estimate=pl.CostEstimate(
            flops=flops,
            transcendentals=transcendentals,
            bytes_accessed=bytes_accessed),
    )(state, codebook, codebook_t, w1, b1, w2, b2, w3, b3)

    att_scores = out[:B, 0:K]
    actions = out[:B, K:K + A]
    # Padded batch rows are excluded by slicing [:B] before the reduction.
    cbloss = jnp.sum(out[:B, K + A]) * (1.0 / (B * D))
    return actions, cbloss, att_scores


def init_params(key, input_dim=24, fc1_dims=64, fc2_dims=64, n_actions=4,
                codebook_size=16):
    """Deterministic synthetic parameter init (PyTorch-Linear-like fan-in scale)."""
    ks = jax.random.split(key, 7)

    def lin(k, fan_in, fan_out):
        bound = 1.0 / jnp.sqrt(fan_in)
        kw, kb = jax.random.split(k)
        w = jax.random.uniform(kw, (fan_in, fan_out), jnp.float32, -bound, bound)
        b = jax.random.uniform(kb, (1, fan_out), jnp.float32, -bound, bound)
        return w, b

    codebook = jax.random.normal(ks[0], (codebook_size, input_dim), jnp.float32)
    w1, b1 = lin(ks[1], input_dim, fc1_dims)
    w2, b2 = lin(ks[2], fc1_dims, fc2_dims)
    w3, b3 = lin(ks[3], fc2_dims, n_actions)
    return codebook, w1, b1, w2, b2, w3, b3


if __name__ == "__main__":
    key = jax.random.PRNGKey(0)
    k_state, k_params = jax.random.split(key)

    B, D = 8, 24            # batch, input_dims
    fc1_dims, fc2_dims, n_actions = 64, 64, 4

    state = jax.random.normal(k_state, (B, D), jnp.float32)
    codebook, w1, b1, w2, b2, w3, b3 = init_params(
        k_params, D, fc1_dims, fc2_dims, n_actions, codebook_size=16)

    actions, cbloss, att_scores = deep_q_forward(
        state, codebook, w1, b1, w2, b2, w3, b3)
    jax.block_until_ready((actions, cbloss, att_scores))

    assert actions.shape == (B, n_actions)
    assert att_scores.shape == (B, 16)
    assert cbloss.shape == ()
    assert bool(jnp.isfinite(cbloss)) and bool(jnp.all(jnp.isfinite(actions)))
    # Exact-divide softmax: rows should sum to 1 to tight tolerance.
    assert bool(jnp.all(jnp.abs(jnp.sum(att_scores, axis=-1) - 1.0) < 1e-5))

    # Cross-check against a pure-JAX reference of the same forward pass.
    def ref_forward(st):
        logits = st @ codebook.T
        att = jax.nn.softmax(logits, axis=-1)
        quant = att @ codebook
        cbl = jnp.mean((quant - st) ** 2)
        h = jnp.maximum(quant @ w1 + b1, 0.0)
        h = jnp.maximum(h @ w2 + b2, 0.0)
        return h @ w3 + b3, cbl, att

    ref_actions, ref_cbloss, ref_att = ref_forward(state)
    assert bool(jnp.allclose(actions, ref_actions, atol=1e-4, rtol=1e-4))
    assert bool(jnp.allclose(att_scores, ref_att, atol=1e-5, rtol=1e-5))
    assert bool(jnp.allclose(cbloss, ref_cbloss, atol=1e-5, rtol=1e-5))

    # Also exercise a larger batch to cover the multi-tile path.
    big_state = jax.random.normal(jax.random.PRNGKey(1), (300, D), jnp.float32)
    big_actions, big_loss, big_att = deep_q_forward(
        big_state, codebook, w1, b1, w2, b2, w3, b3)
    jax.block_until_ready((big_actions, big_loss, big_att))
    assert big_actions.shape == (300, n_actions)
    assert bool(jnp.isfinite(big_loss))

    print("KERNEL_OK")
</pallas_src>

<mosaic_0001>
module attributes {stable_mosaic.version = 11 : i64} {
  func.func @_dqn_kernel(%arg0: i32, %arg1: memref<8x24xf32, #tpu.memory_space<vmem>>, %arg2: memref<16x24xf32, #tpu.memory_space<vmem>>, %arg3: memref<24x16xf32, #tpu.memory_space<vmem>>, %arg4: memref<24x64xf32, #tpu.memory_space<vmem>>, %arg5: memref<1x64xf32, #tpu.memory_space<vmem>>, %arg6: memref<64x64xf32, #tpu.memory_space<vmem>>, %arg7: memref<1x64xf32, #tpu.memory_space<vmem>>, %arg8: memref<64x4xf32, #tpu.memory_space<vmem>>, %arg9: memref<1x4xf32, #tpu.memory_space<vmem>>, %arg10: memref<8x128xf32, #tpu.memory_space<vmem>>) attributes {dimension_semantics = [#tpu.dimension_semantics<parallel>], iteration_bounds = array<i64: 1>, scalar_prefetch = 0 : i64, scratch_operands = 0 : i64, tpu.core_type = #tpu.core_type<tc>, window_params = [{transform_indices = @transform_0, window_bounds = array<i64: 8, 24>}, {pipeline_mode = #tpu.pipeline_mode<synchronous>, transform_indices = @transform_1, window_bounds = array<i64: 16, 24>}, {pipeline_mode = #tpu.pipeline_mode<synchronous>, transform_indices = @transform_2, window_bounds = array<i64: 24, 16>}, {pipeline_mode = #tpu.pipeline_mode<synchronous>, transform_indices = @transform_3, window_bounds = array<i64: 24, 64>}, {pipeline_mode = #tpu.pipeline_mode<synchronous>, transform_indices = @transform_4, window_bounds = array<i64: 1, 64>}, {pipeline_mode = #tpu.pipeline_mode<synchronous>, transform_indices = @transform_5, window_bounds = array<i64: 64, 64>}, {pipeline_mode = #tpu.pipeline_mode<synchronous>, transform_indices = @transform_6, window_bounds = array<i64: 1, 64>}, {pipeline_mode = #tpu.pipeline_mode<synchronous>, transform_indices = @transform_7, window_bounds = array<i64: 64, 4>}, {pipeline_mode = #tpu.pipeline_mode<synchronous>, transform_indices = @transform_8, window_bounds = array<i64: 1, 4>}, {transform_indices = @transform_9, window_bounds = array<i64: 8, 128>}]} {
    %c0 = arith.constant 0 : index
    %c0_0 = arith.constant 0 : index
    %0 = vector.load %arg1[%c0, %c0_0] : memref<8x24xf32, #tpu.memory_space<vmem>>, vector<8x24xf32>
    %c0_1 = arith.constant 0 : index
    %c0_2 = arith.constant 0 : index
    %1 = vector.load %arg2[%c0_1, %c0_2] : memref<16x24xf32, #tpu.memory_space<vmem>>, vector<16x24xf32>
    %c0_3 = arith.constant 0 : index
    %c0_4 = arith.constant 0 : index
    %2 = vector.load %arg3[%c0_3, %c0_4] : memref<24x16xf32, #tpu.memory_space<vmem>>, vector<24x16xf32>
    %cst = arith.constant dense<0.000000e+00> : vector<8x16xf32>
    %3 = tpu.matmul %0, %2, %cst {dimension_numbers = #tpu.dot_dimension_numbers<[1], [0], [0], [1], [0, 0, 1, 1], [], []>} : vector<8x24xf32>, vector<24x16xf32>, vector<8x16xf32> -> vector<8x16xf32>
    %cst_5 = arith.constant dense<0xFF800000> : vector<8xf32>
    %4 = vector.multi_reduction <maximumf>, %3, %cst_5 [1] : vector<8x16xf32> to vector<8xf32>
    %5 = vector.shape_cast %4 : vector<8xf32> to vector<8x1xf32>
    %6 = vector.broadcast %5 : vector<8x1xf32> to vector<8x16xf32>
    %7 = arith.subf %3, %6 : vector<8x16xf32>
    %8 = math.exp %7 : vector<8x16xf32>
    %cst_6 = arith.constant dense<0.000000e+00> : vector<8xf32>
    %9 = vector.multi_reduction <add>, %8, %cst_6 [1] : vector<8x16xf32> to vector<8xf32>
    %10 = vector.shape_cast %9 : vector<8xf32> to vector<8x1xf32>
    %11 = vector.broadcast %10 : vector<8x1xf32> to vector<8x16xf32>
    %12 = arith.divf %8, %11 : vector<8x16xf32>
    %cst_7 = arith.constant dense<0.000000e+00> : vector<8x24xf32>
    %13 = tpu.matmul %12, %1, %cst_7 {dimension_numbers = #tpu.dot_dimension_numbers<[1], [0], [0], [1], [0, 0, 1, 1], [], []>} : vector<8x16xf32>, vector<16x24xf32>, vector<8x24xf32> -> vector<8x24xf32>
    %14 = arith.subf %13, %0 : vector<8x24xf32>
    %15 = arith.mulf %14, %14 : vector<8x24xf32>
    %cst_8 = arith.constant dense<0.000000e+00> : vector<8xf32>
    %16 = vector.multi_reduction <add>, %15, %cst_8 [1] : vector<8x24xf32> to vector<8xf32>
    %17 = vector.shape_cast %16 : vector<8xf32> to vector<8x1xf32>
    %c0_9 = arith.constant 0 : index
    %c0_10 = arith.constant 0 : index
    %18 = vector.load %arg4[%c0_9, %c0_10] : memref<24x64xf32, #tpu.memory_space<vmem>>, vector<24x64xf32>
    %cst_11 = arith.constant dense<0.000000e+00> : vector<8x64xf32>
    %19 = tpu.matmul %13, %18, %cst_11 {dimension_numbers = #tpu.dot_dimension_numbers<[1], [0], [0], [1], [0, 0, 1, 1], [], []>} : vector<8x24xf32>, vector<24x64xf32>, vector<8x64xf32> -> vector<8x64xf32>
    %c0_12 = arith.constant 0 : index
    %c0_13 = arith.constant 0 : index
    %20 = vector.load %arg5[%c0_12, %c0_13] : memref<1x64xf32, #tpu.memory_space<vmem>>, vector<1x64xf32>
    %21 = vector.broadcast %20 : vector<1x64xf32> to vector<8x64xf32>
    %22 = arith.addf %19, %21 : vector<8x64xf32>
    %cst_14 = arith.constant 0.000000e+00 : f32
    %23 = vector.broadcast %cst_14 : f32 to vector<8x64xf32>
    %24 = arith.maximumf %22, %23 : vector<8x64xf32>
    %c0_15 = arith.constant 0 : index
    %c0_16 = arith.constant 0 : index
    %25 = vector.load %arg6[%c0_15, %c0_16] : memref<64x64xf32, #tpu.memory_space<vmem>>, vector<64x64xf32>
    %cst_17 = arith.constant dense<0.000000e+00> : vector<8x64xf32>
    %26 = tpu.matmul %24, %25, %cst_17 {dimension_numbers = #tpu.dot_dimension_numbers<[1], [0], [0], [1], [0, 0, 1, 1], [], []>} : vector<8x64xf32>, vector<64x64xf32>, vector<8x64xf32> -> vector<8x64xf32>
    %c0_18 = arith.constant 0 : index
    %c0_19 = arith.constant 0 : index
    %27 = vector.load %arg7[%c0_18, %c0_19] : memref<1x64xf32, #tpu.memory_space<vmem>>, vector<1x64xf32>
    %28 = vector.broadcast %27 : vector<1x64xf32> to vector<8x64xf32>
    %29 = arith.addf %26, %28 : vector<8x64xf32>
    %cst_20 = arith.constant 0.000000e+00 : f32
    %30 = vector.broadcast %cst_20 : f32 to vector<8x64xf32>
    %31 = arith.maximumf %29, %30 : vector<8x64xf32>
    %c0_21 = arith.constant 0 : index
    %c0_22 = arith.constant 0 : index
    %32 = vector.load %arg8[%c0_21, %c0_22] : memref<64x4xf32, #tpu.memory_space<vmem>>, vector<64x4xf32>
    %cst_23 = arith.constant dense<0.000000e+00> : vector<8x4xf32>
    %33 = tpu.matmul %31, %32, %cst_23 {dimension_numbers = #tpu.dot_dimension_numbers<[1], [0], [0], [1], [0, 0, 1, 1], [], []>} : vector<8x64xf32>, vector<64x4xf32>, vector<8x4xf32> -> vector<8x4xf32>
    %c0_24 = arith.constant 0 : index
    %c0_25 = arith.constant 0 : index
    %34 = vector.load %arg9[%c0_24, %c0_25] : memref<1x4xf32, #tpu.memory_space<vmem>>, vector<1x4xf32>
    %35 = vector.broadcast %34 : vector<1x4xf32> to vector<8x4xf32>
    %36 = arith.addf %33, %35 : vector<8x4xf32>
    %cst_26 = arith.constant 0.000000e+00 : f32
    %37 = vector.broadcast %cst_26 : f32 to vector<8x107xf32>
    %38 = tpu.concatenate %12, %36, %17, %37 in 1 : vector<8x16xf32>, vector<8x4xf32>, vector<8x1xf32>, vector<8x107xf32> -> vector<8x128xf32>
    %c0_27 = arith.constant 0 : index
    %c0_28 = arith.constant 0 : index
    %39 = vector.load %arg10[%c0_27, %c0_28] : memref<8x128xf32, #tpu.memory_space<vmem>>, vector<8x128xf32>
    tpu.vector_store %arg10[%c0_27, %c0_28], %38 {strides = array<i32>} : memref<8x128xf32, #tpu.memory_space<vmem>>, vector<8x128xf32>,
    return
  }
  func.func @transform_0(%arg0: i32) -> (i32, i32) {
    %c0_i32 = arith.constant 0 : i32
    %c0_i32_0 = arith.constant 0 : i32
    return %arg0, %c0_i32 : i32, i32
  }
  func.func @transform_1(%arg0: i32) -> (i32, i32) {
    %c0_i32 = arith.constant 0 : i32
    %c0_i32_0 = arith.constant 0 : i32
    %c0_i32_1 = arith.constant 0 : i32
    return %c0_i32, %c0_i32_0 : i32, i32
  }
  func.func @transform_2(%arg0: i32) -> (i32, i32) {
    %c0_i32 = arith.constant 0 : i32
    %c0_i32_0 = arith.constant 0 : i32
    %c0_i32_1 = arith.constant 0 : i32
    return %c0_i32, %c0_i32_0 : i32, i32
  }
  func.func @transform_3(%arg0: i32) -> (i32, i32) {
    %c0_i32 = arith.constant 0 : i32
    %c0_i32_0 = arith.constant 0 : i32
    %c0_i32_1 = arith.constant 0 : i32
    return %c0_i32, %c0_i32_0 : i32, i32
  }
  func.func @transform_4(%arg0: i32) -> (i32, i32) {
    %c0_i32 = arith.constant 0 : i32
    %c0_i32_0 = arith.constant 0 : i32
    %c0_i32_1 = arith.constant 0 : i32
    return %c0_i32, %c0_i32_0 : i32, i32
  }
  func.func @transform_5(%arg0: i32) -> (i32, i32) {
    %c0_i32 = arith.constant 0 : i32
    %c0_i32_0 = arith.constant 0 : i32
    %c0_i32_1 = arith.constant 0 : i32
    return %c0_i32, %c0_i32_0 : i32, i32
  }
  func.func @transform_6(%arg0: i32) -> (i32, i32) {
    %c0_i32 = arith.constant 0 : i32
    %c0_i32_0 = arith.constant 0 : i32
    %c0_i32_1 = arith.constant 0 : i32
    return %c0_i32, %c0_i32_0 : i32, i32
  }
  func.func @transform_7(%arg0: i32) -> (i32, i32) {
    %c0_i32 = arith.constant 0 : i32
    %c0_i32_0 = arith.constant 0 : i32
    %c0_i32_1 = arith.constant 0 : i32
    return %c0_i32, %c0_i32_0 : i32, i32
  }
  func.func @transform_8(%arg0: i32) -> (i32, i32) {
    %c0_i32 = arith.constant 0 : i32
    %c0_i32_0 = arith.constant 0 : i32
    %c0_i32_1 = arith.constant 0 : i32
    return %c0_i32, %c0_i32_0 : i32, i32
  }
  func.func @transform_9(%arg0: i32) -> (i32, i32) {
    %c0_i32 = arith.constant 0 : i32
    %c0_i32_0 = arith.constant 0 : i32
    return %arg0, %c0_i32 : i32, i32
  }
}

</mosaic_0001>

<llo_original>
// kernel: tpu_custom_call.1
$region0: #{tpu_custom_call.1}
  #allocation0 [shape = 'u32[]', space=smem, size = 0x4, offset = 0x4, fixed_abs, tag = 'smem constant byte address 0x4 - core index']
  #allocation1 [shape = 'u32[144,128]{1,0:T(1,128)}', space=vmem, size = 0x12000, scoped, tag = 'internal scratch']
  %s0 = inlined_call_operand.vmem [shape: f32[8,24], index: 0, kind: input, shape index: {}]
  %s1 = inlined_call_operand.vmem [shape: f32[16,24], index: 1, kind: input, shape index: {}]
  %s2 = inlined_call_operand.vmem [shape: f32[24,16], index: 2, kind: input, shape index: {}]
  %s3 = inlined_call_operand.vmem [shape: f32[24,64], index: 3, kind: input, shape index: {}]
  %s4 = inlined_call_operand.vmem [shape: f32[1,64], index: 4, kind: input, shape index: {}]
  %s5 = inlined_call_operand.vmem [shape: f32[64,64], index: 5, kind: input, shape index: {}]
  %s6 = inlined_call_operand.vmem [shape: f32[1,64], index: 6, kind: input, shape index: {}]
  %s7 = inlined_call_operand.vmem [shape: f32[64,4], index: 7, kind: input, shape index: {}]
  %s8 = inlined_call_operand.vmem [shape: f32[1,4], index: 8, kind: input, shape index: {}]
  %s9 = inlined_call_operand.hbm [shape: f32[8,128], index: 9, kind: output, shape index: {}]
  %s10 = sld [smem:[#allocation0]]
  $region46: #{tpu_custom_call.1} parent=0
    _
  %s12 = ssub.s32 1, %s10
  %s13 = scalar_select 0, %s12, %s10
  $region1: #{tpu_custom_call.1} parent=0
    #allocation2 [shape = 'u8[4096]{0}', space=vmem, size = 0x1000, scoped, tag = 'output window, operand 0, single buffered']
    #allocation3 [shape = 's32[1]{0}', space=sflag, size = 0x4, scoped, tag = 'scoped memory for tpu_custom_call.1']
    %14 = vsyncpa [#allocation3], 0
    // Predicated region
    $region2: #{tpu_custom_call.1} parent=1 // pred_check
      _
    $region3: #{tpu_custom_call.1} parent=1 // pred_check_branch
      %16 = sbr.rel (0) target = $region5
    $region4: #{tpu_custom_call.1} parent=1 // pred_region
      _
    $region5: #{tpu_custom_call.1} parent=1 // pred_fallthru
      _
    // Predicated region
    $region6: #{tpu_custom_call.1} parent=1 // pred_check
      _
    $region7: #{tpu_custom_call.1} parent=1 // pred_check_branch
      %18 = sbr.rel (0) target = $region9
    $region8: #{tpu_custom_call.1} parent=1 // pred_region
      _
    $region9: #{tpu_custom_call.1} parent=1 // pred_fallthru
      _
    // Predicated region
    $region10: #{tpu_custom_call.1} parent=1 // pred_check
      _
    $region11: #{tpu_custom_call.1} parent=1 // pred_check_branch
      %20 = sbr.rel (0) target = $region13
    $region12: #{tpu_custom_call.1} parent=1 // pred_region
      _
    $region13: #{tpu_custom_call.1} parent=1 // pred_fallthru
      _
    // Predicated region
    $region14: #{tpu_custom_call.1} parent=1 // pred_check
      _
    $region15: #{tpu_custom_call.1} parent=1 // pred_check_branch
      %22 = sbr.rel (0) target = $region17
    $region16: #{tpu_custom_call.1} parent=1 // pred_region
      _
    $region17: #{tpu_custom_call.1} parent=1 // pred_fallthru
      _
    // Predicated region
    $region18: #{tpu_custom_call.1} parent=1 // pred_check
      _
    $region19: #{tpu_custom_call.1} parent=1 // pred_check_branch
      %24 = sbr.rel (0) target = $region21
    $region20: #{tpu_custom_call.1} parent=1 // pred_region
      _
    $region21: #{tpu_custom_call.1} parent=1 // pred_fallthru
      _
    // Predicated region
    $region22: #{tpu_custom_call.1} parent=1 // pred_check
      _
    $region23: #{tpu_custom_call.1} parent=1 // pred_check_branch
      %26 = sbr.rel (0) target = $region25
    $region24: #{tpu_custom_call.1} parent=1 // pred_region
      _
    $region25: #{tpu_custom_call.1} parent=1 // pred_fallthru
      _
    // Predicated region
    $region26: #{tpu_custom_call.1} parent=1 // pred_check
      _
    $region27: #{tpu_custom_call.1} parent=1 // pred_check_branch
      %28 = sbr.rel (0) target = $region29
    $region28: #{tpu_custom_call.1} parent=1 // pred_region
      _
    $region29: #{tpu_custom_call.1} parent=1 // pred_fallthru
      _
    // Predicated region
    $region30: #{tpu_custom_call.1} parent=1 // pred_check
      _
    $region31: #{tpu_custom_call.1} parent=1 // pred_check_branch
      %30 = sbr.rel (0) target = $region33
    $region32: #{tpu_custom_call.1} parent=1 // pred_region
      _
    $region33: #{tpu_custom_call.1} parent=1 // pred_fallthru
      _
    // Predicated region
    $region34: #{tpu_custom_call.1} parent=1 // pred_check
      _
    $region35: #{tpu_custom_call.1} parent=1 // pred_check_branch
      %32 = sbr.rel (0) target = $region37
    $region36: #{tpu_custom_call.1} parent=1 // pred_region
      _
    $region37: #{tpu_custom_call.1} parent=1 // pred_fallthru
      _
    %v33 = vld [vmem:[%s0] sm:$0xff]
    %v34 = vld [vmem:[%s1] sm:$0xff]
    %v35 = vld [vmem:[%s1 + $0x8] sm:$0xff]
    %v36 = vld [vmem:[%s2] sm:$0xff]
    %v37 = vld [vmem:[%s2 + $0x8] sm:$0xff]
    %v38 = vld [vmem:[%s2 + $0x10] sm:$0xff]
    %vm39 = vcmask 195584
    %v41 = vsel %vm39, %v33, 0
    %43 = vmatprep.subr.mxu0 0.0
    %44 = vmatpush1.msra.mxu0 %v36
    %45 = vmatprep.subr.mxu0 0.0
    %46 = vmatpush1.msra.mxu0 %v37
    %47 = vmatprep.subr.mxu0 0.0
    %48 = vmatpush1.msra.mxu0 %v38
    %49 = vmatprep.subr.mxu0 0.0
    %50 = vmatpush1.msra.mxu0 0.0
    %51 = vmatprep.subr.mxu0 0.0
    %52 = vmatpush1.msra.mxu0 0.0
    %53 = vmatprep.subr.mxu0 0.0
    %54 = vmatpush1.msra.mxu0 0.0
    %55 = vmatprep.subr.mxu0 0.0
    %56 = vmatpush1.msra.mxu0 0.0
    %57 = vmatprep.subr.mxu0 0.0
    %58 = vmatpush1.msra.mxu0 0.0
    %59 = vmatprep.subr.mxu0 0.0
    %60 = vmatpush1.msra.mxu0 0.0
    %61 = vmatprep.subr.mxu0 0.0
    %62 = vmatpush1.msra.mxu0 0.0
    %63 = vmatprep.subr.mxu0 0.0
    %64 = vmatpush1.msra.mxu0 0.0
    %65 = vmatprep.subr.mxu0 0.0
    %66 = vmatpush1.msra.mxu0 0.0
    %67 = vmatprep.subr.mxu0 0.0
    %68 = vmatpush1.msra.mxu0 0.0
    %69 = vmatprep.subr.mxu0 0.0
    %70 = vmatpush1.msra.mxu0 0.0
    %71 = vmatprep.subr.mxu0 0.0
    %72 = vmatpush1.msra.mxu0 0.0
    %73 = vmatprep.subr.mxu0 0.0
    %74 = vmatpush1.msra.mxu0 0.0
    %75 = vmatprep.subr.mxu0 0.0
    %76 = vmatpush1.msra.mxu0 0.0
    %77 = vmatprep.subr.mxu0 0.0
    %78 = vmatpush1.msra.mxu0 0.0
    %79 = vmatprep.subr.mxu0 0.0
    %80 = vmatpush1.msra.mxu0 0.0
    %81 = vmatprep.subr.mxu0 0.0
    %82 = vmatpush1.msra.mxu0 0.0
    %83 = vmatprep.subr.mxu0 0.0
    %84 = vmatpush1.msra.mxu0 0.0
    %85 = vmatprep.subr.mxu0 0.0
    %86 = vmatpush1.msra.mxu0 0.0
    %87 = vmatprep.subr.mxu0 0.0
    %88 = vmatpush1.msra.mxu0 0.0
    %89 = vmatprep.subr.mxu0 0.0
    %90 = vmatpush1.msra.mxu0 0.0
    %91 = vmatprep.subr.mxu0 0.0
    %92 = vmatpush1.msra.mxu0 0.0
    %93 = vmatprep.subr.mxu0 0.0
    %94 = vmatpush1.msra.mxu0 0.0
    %95 = vmatprep.subr.mxu0 0.0
    %96 = vmatpush1.msra.mxu0 0.0
    %97 = vmatprep.subr.mxu0 0.0
    %98 = vmatpush1.msra.mxu0 0.0
    %99 = vmatprep.subr.mxu0 0.0
    %100 = vmatpush1.msra.mxu0 0.0
    %101 = vmatprep.subr.mxu0 0.0
    %102 = vmatpush1.msra.mxu0 0.0
    %103 = vmatprep.subr.mxu0 0.0
    %104 = vmatpush1.msra.mxu0 0.0
    %105 = vmatprep.subr.mxu0 0.0
    %106 = vmatpush1.msra.mxu0 0.0
    %107 = vmatprep.mubr.f32.mxu0 0.0
    %108 = vmatmul.mubr.f32.gmra.mrb[0].mxu0 %v41
    %v109 = vpop.f32.mrb[0].mxu0
    %v110 = vadd.f32 0.0, %v109
    %v111 = vpop.f32.mrb[0].mxu0
    %112 = vdwg.mxu0
    %vm113 = vcmask 130048
    %v114 = vsel %vm113, %v110, -inf
    %115 = vmax.xlane.f32.xlu0 %v114
    %v116 = vpop.xlane.xlu0 %115
    %v117 = vsub.f32 %v110, %v116
    %v118 = vmul.f32 %v117, 1.442695
    %v119 = vpow.pop %v118
    %v120 = vsel %vm113, %v119, 0.0
    %121 = vadd.xlane.f32.xlu0 %v120
    %v122 = vpop.xlane.xlu0 %121
    %v123 = vrcp.pop %v122
    %v124 = vmul.f32 %v119, %v123
    %v126 = vsel %vm113, %v124, 0
    %128 = vmatprep.subr.mxu0 0.0
    %129 = vmatpush1.msra.mxu0 %v34
    %130 = vmatprep.subr.mxu0 0.0
    %131 = vmatpush1.msra.mxu0 %v35
    %132 = vmatprep.subr.mxu0 0.0
    %133 = vmatpush1.msra.mxu0 0.0
    %134 = vmatprep.subr.mxu0 0.0
    %135 = vmatpush1.msra.mxu0 0.0
    %136 = vmatprep.subr.mxu0 0.0
    %137 = vmatpush1.msra.mxu0 0.0
    %138 = vmatprep.subr.mxu0 0.0
    %139 = vmatpush1.msra.mxu0 0.0
    %140 = vmatprep.subr.mxu0 0.0
    %141 = vmatpush1.msra.mxu0 0.0
    %142 = vmatprep.subr.mxu0 0.0
    %143 = vmatpush1.msra.mxu0 0.0
    %144 = vmatprep.subr.mxu0 0.0
    %145 = vmatpush1.msra.mxu0 0.0
    %146 = vmatprep.subr.mxu0 0.0
    %147 = vmatpush1.msra.mxu0 0.0
    %148 = vmatprep.subr.mxu0 0.0
    %149 = vmatpush1.msra.mxu0 0.0
    %150 = vmatprep.subr.mxu0 0.0
    %151 = vmatpush1.msra.mxu0 0.0
    %152 = vmatprep.subr.mxu0 0.0
    %153 = vmatpush1.msra.mxu0 0.0
    %154 = vmatprep.subr.mxu0 0.0
    %155 = vmatpush1.msra.mxu0 0.0
    %156 = vmatprep.subr.mxu0 0.0
    %157 = vmatpush1.msra.mxu0 0.0
    %158 = vmatprep.subr.mxu0 0.0
    %159 = vmatpush1.msra.mxu0 0.0
    %160 = vmatprep.subr.mxu0 0.0
    %161 = vmatpush1.msra.mxu0 0.0
    %162 = vmatprep.subr.mxu0 0.0
    %163 = vmatpush1.msra.mxu0 0.0
    %164 = vmatprep.subr.mxu0 0.0
    %165 = vmatpush1.msra.mxu0 0.0
    %166 = vmatprep.subr.mxu0 0.0
    %167 = vmatpush1.msra.mxu0 0.0
    %168 = vmatprep.subr.mxu0 0.0
    %169 = vmatpush1.msra.mxu0 0.0
    %170 = vmatprep.subr.mxu0 0.0
    %171 = vmatpush1.msra.mxu0 0.0
    %172 = vmatprep.subr.mxu0 0.0
    %173 = vmatpush1.msra.mxu0 0.0
    %174 = vmatprep.subr.mxu0 0.0
    %175 = vmatpush1.msra.mxu0 0.0
    %176 = vmatprep.subr.mxu0 0.0
    %177 = vmatpush1.msra.mxu0 0.0
    %178 = vmatprep.subr.mxu0 0.0
    %179 = vmatpush1.msra.mxu0 0.0
    %180 = vmatprep.subr.mxu0 0.0
    %181 = vmatpush1.msra.mxu0 0.0
    %182 = vmatprep.subr.mxu0 0.0
    %183 = vmatpush1.msra.mxu0 0.0
    %184 = vmatprep.subr.mxu0 0.0
    %185 = vmatpush1.msra.mxu0 0.0
    %186 = vmatprep.subr.mxu0 0.0
    %187 = vmatpush1.msra.mxu0 0.0
    %188 = vmatprep.subr.mxu0 0.0
    %189 = vmatpush1.msra.mxu0 0.0
    %190 = vmatprep.subr.mxu0 0.0
    %191 = vmatpush1.msra.mxu0 0.0
    %192 = vmatprep.mubr.f32.mxu0 0.0
    %193 = vmatmul.mubr.f32.gmra.mrb[0].mxu0 %v126
    %v194 = vpop.f32.mrb[0].mxu0
    %v195 = vadd.f32 0.0, %v194
    %v196 = vpop.f32.mrb[0].mxu0
    %197 = vdwg.mxu0
    %v198 = vsub.f32 %v195, %v33
    %v199 = vmul.f32 %v198, %v198
    %v200 = vsel %vm39, %v199, 0.0
    %201 = vadd.xlane.f32.xlu0 %v200
    %v202 = vpop.xlane.xlu0 %201
    %v203 = vld [vmem:[%s3] sm:$0xff]
    %v204 = vld [vmem:[%s3 + $0x8] sm:$0xff]
    %v205 = vld [vmem:[%s3 + $0x10] sm:$0xff]
    %v206 = vld [vmem:[%s4] sm:$0x1]
    %v208 = vlaneseq
    %v209 = vshrl.u32 %v208, 7
    %v210 = vsub.s32 0, %v209
    %v211 = vrot.slane %v206, %v210
    %v214 = vsel %vm39, %v195, 0
    %216 = vmatprep.subr.mxu0 0.0
    %217 = vmatpush1.msra.mxu0 %v203
    %218 = vmatprep.subr.mxu0 0.0
    %219 = vmatpush1.msra.mxu0 %v204
    %220 = vmatprep.subr.mxu0 0.0
    %221 = vmatpush1.msra.mxu0 %v205
    %222 = vmatprep.subr.mxu0 0.0
    %223 = vmatpush1.msra.mxu0 0.0
    %224 = vmatprep.subr.mxu0 0.0
    %225 = vmatpush1.msra.mxu0 0.0
    %226 = vmatprep.subr.mxu0 0.0
    %227 = vmatpush1.msra.mxu0 0.0
    %228 = vmatprep.subr.mxu0 0.0
    %229 = vmatpush1.msra.mxu0 0.0
    %230 = vmatprep.subr.mxu0 0.0
    %231 = vmatpush1.msra.mxu0 0.0
    %232 = vmatprep.subr.mxu0 0.0
    %233 = vmatpush1.msra.mxu0 0.0
    %234 = vmatprep.subr.mxu0 0.0
    %235 = vmatpush1.msra.mxu0 0.0
    %236 = vmatprep.subr.mxu0 0.0
    %237 = vmatpush1.msra.mxu0 0.0
    %238 = vmatprep.subr.mxu0 0.0
    %239 = vmatpush1.msra.mxu0 0.0
    %240 = vmatprep.subr.mxu0 0.0
    %241 = vmatpush1.msra.mxu0 0.0
    %242 = vmatprep.subr.mxu0 0.0
    %243 = vmatpush1.msra.mxu0 0.0
    %244 = vmatprep.subr.mxu0 0.0
    %245 = vmatpush1.msra.mxu0 0.0
    %246 = vmatprep.subr.mxu0 0.0
    %247 = vmatpush1.msra.mxu0 0.0
    %248 = vmatprep.subr.mxu0 0.0
    %249 = vmatpush1.msra.mxu0 0.0
    %250 = vmatprep.subr.mxu0 0.0
    %251 = vmatpush1.msra.mxu0 0.0
    %252 = vmatprep.subr.mxu0 0.0
    %253 = vmatpush1.msra.mxu0 0.0
    %254 = vmatprep.subr.mxu0 0.0
    %255 = vmatpush1.msra.mxu0 0.0
    %256 = vmatprep.subr.mxu0 0.0
    %257 = vmatpush1.msra.mxu0 0.0
    %258 = vmatprep.subr.mxu0 0.0
    %259 = vmatpush1.msra.mxu0 0.0
    %260 = vmatprep.subr.mxu0 0.0
    %261 = vmatpush1.msra.mxu0 0.0
    %262 = vmatprep.subr.mxu0 0.0
    %263 = vmatpush1.msra.mxu0 0.0
    %264 = vmatprep.subr.mxu0 0.0
    %265 = vmatpush1.msra.mxu0 0.0
    %266 = vmatprep.subr.mxu0 0.0
    %267 = vmatpush1.msra.mxu0 0.0
    %268 = vmatprep.subr.mxu0 0.0
    %269 = vmatpush1.msra.mxu0 0.0
    %270 = vmatprep.subr.mxu0 0.0
    %271 = vmatpush1.msra.mxu0 0.0
    %272 = vmatprep.subr.mxu0 0.0
    %273 = vmatpush1.msra.mxu0 0.0
    %274 = vmatprep.subr.mxu0 0.0
    %275 = vmatpush1.msra.mxu0 0.0
    %276 = vmatprep.subr.mxu0 0.0
    %277 = vmatpush1.msra.mxu0 0.0
    %278 = vmatprep.subr.mxu0 0.0
    %279 = vmatpush1.msra.mxu0 0.0
    %280 = vmatprep.mubr.f32.mxu0 0.0
    %281 = vmatmul.mubr.f32.gmra.mrb[0].mxu0 %v214
    %v282 = vpop.f32.mrb[0].mxu0
    %v283 = vadd.f32 %v211, %v282
    %v284 = vpop.f32.mrb[0].mxu0
    %285 = vdwg.mxu0
    %v286 = vmax.f32 %v283, 0.0
    %v287 = vld [vmem:[%s5] sm:$0xff]
    %v288 = vld [vmem:[%s5 + $0x8] sm:$0xff]
    %v289 = vld [vmem:[%s5 + $0x10] sm:$0xff]
    %v290 = vld [vmem:[%s5 + $0x18] sm:$0xff]
    %v291 = vld [vmem:[%s5 + $0x20] sm:$0xff]
    %v292 = vld [vmem:[%s5 + $0x28] sm:$0xff]
    %v293 = vld [vmem:[%s5 + $0x30] sm:$0xff]
    %v294 = vld [vmem:[%s5 + $0x38] sm:$0xff]
    %v295 = vld [vmem:[%s6] sm:$0x1]
    %v297 = vlaneseq
    %v298 = vshrl.u32 %v297, 7
    %v299 = vsub.s32 0, %v298
    %v300 = vrot.slane %v295, %v299
    %vm302 = vcmask 523264
    %v304 = vsel %vm302, %v286, 0
    %306 = vmatprep.subr.mxu0 0.0
    %307 = vmatpush1.msra.mxu0 %v287
    %308 = vmatprep.subr.mxu0 0.0
    %309 = vmatpush1.msra.mxu0 %v288
    %310 = vmatprep.subr.mxu0 0.0
    %311 = vmatpush1.msra.mxu0 %v289
    %312 = vmatprep.subr.mxu0 0.0
    %313 = vmatpush1.msra.mxu0 %v290
    %314 = vmatprep.subr.mxu0 0.0
    %315 = vmatpush1.msra.mxu0 %v291
    %316 = vmatprep.subr.mxu0 0.0
    %317 = vmatpush1.msra.mxu0 %v292
    %318 = vmatprep.subr.mxu0 0.0
    %319 = vmatpush1.msra.mxu0 %v293
    %320 = vmatprep.subr.mxu0 0.0
    %321 = vmatpush1.msra.mxu0 %v294
    %322 = vmatprep.subr.mxu0 0.0
    %323 = vmatpush1.msra.mxu0 0.0
    %324 = vmatprep.subr.mxu0 0.0
    %325 = vmatpush1.msra.mxu0 0.0
    %326 = vmatprep.subr.mxu0 0.0
    %327 = vmatpush1.msra.mxu0 0.0
    %328 = vmatprep.subr.mxu0 0.0
    %329 = vmatpush1.msra.mxu0 0.0
    %330 = vmatprep.subr.mxu0 0.0
    %331 = vmatpush1.msra.mxu0 0.0
    %332 = vmatprep.subr.mxu0 0.0
    %333 = vmatpush1.msra.mxu0 0.0
    %334 = vmatprep.subr.mxu0 0.0
    %335 = vmatpush1.msra.mxu0 0.0
    %336 = vmatprep.subr.mxu0 0.0
    %337 = vmatpush1.msra.mxu0 0.0
    %338 = vmatprep.subr.mxu0 0.0
    %339 = vmatpush1.msra.mxu0 0.0
    %340 = vmatprep.subr.mxu0 0.0
    %341 = vmatpush1.msra.mxu0 0.0
    %342 = vmatprep.subr.mxu0 0.0
    %343 = vmatpush1.msra.mxu0 0.0
    %344 = vmatprep.subr.mxu0 0.0
    %345 = vmatpush1.msra.mxu0 0.0
    %346 = vmatprep.subr.mxu0 0.0
    %347 = vmatpush1.msra.mxu0 0.0
    %348 = vmatprep.subr.mxu0 0.0
    %349 = vmatpush1.msra.mxu0 0.0
    %350 = vmatprep.subr.mxu0 0.0
    %351 = vmatpush1.msra.mxu0 0.0
    %352 = vmatprep.subr.mxu0 0.0
    %353 = vmatpush1.msra.mxu0 0.0
    %354 = vmatprep.subr.mxu0 0.0
    %355 = vmatpush1.msra.mxu0 0.0
    %356 = vmatprep.subr.mxu0 0.0
    %357 = vmatpush1.msra.mxu0 0.0
    %358 = vmatprep.subr.mxu0 0.0
    %359 = vmatpush1.msra.mxu0 0.0
    %360 = vmatprep.subr.mxu0 0.0
    %361 = vmatpush1.msra.mxu0 0.0
    %362 = vmatprep.subr.mxu0 0.0
    %363 = vmatpush1.msra.mxu0 0.0
    %364 = vmatprep.subr.mxu0 0.0
    %365 = vmatpush1.msra.mxu0 0.0
    %366 = vmatprep.subr.mxu0 0.0
    %367 = vmatpush1.msra.mxu0 0.0
    %368 = vmatprep.subr.mxu0 0.0
    %369 = vmatpush1.msra.mxu0 0.0
    %370 = vmatprep.mubr.f32.mxu0 0.0
    %371 = vmatmul.mubr.f32.gmra.mrb[0].mxu0 %v304
    %v372 = vpop.f32.mrb[0].mxu0
    %v373 = vadd.f32 %v300, %v372
    %v374 = vpop.f32.mrb[0].mxu0
    %375 = vdwg.mxu0
    %v376 = vmax.f32 %v373, 0.0
    %v377 = vld [vmem:[%s7] sm:$0xff]
    %v378 = vld [vmem:[%s7 + $0x8] sm:$0xff]
    %v379 = vld [vmem:[%s7 + $0x10] sm:$0xff]
    %v380 = vld [vmem:[%s7 + $0x18] sm:$0xff]
    %v381 = vld [vmem:[%s7 + $0x20] sm:$0xff]
    %v382 = vld [vmem:[%s7 + $0x28] sm:$0xff]
    %v383 = vld [vmem:[%s7 + $0x30] sm:$0xff]
    %v384 = vld [vmem:[%s7 + $0x38] sm:$0xff]
    %v385 = vld [vmem:[%s8] sm:$0x1]
    %v387 = vlaneseq
    %v388 = vshrl.u32 %v387, 7
    %v389 = vsub.s32 0, %v388
    %v390 = vrot.slane %v385, %v389
    %v393 = vsel %vm302, %v376, 0
    %395 = vmatprep.subr.mxu0 0.0
    %396 = vmatpush1.msra.mxu0 %v377
    %397 = vmatprep.subr.mxu0 0.0
    %398 = vmatpush1.msra.mxu0 %v378
    %399 = vmatprep.subr.mxu0 0.0
    %400 = vmatpush1.msra.mxu0 %v379
    %401 = vmatprep.subr.mxu0 0.0
    %402 = vmatpush1.msra.mxu0 %v380
    %403 = vmatprep.subr.mxu0 0.0
    %404 = vmatpush1.msra.mxu0 %v381
    %405 = vmatprep.subr.mxu0 0.0
    %406 = vmatpush1.msra.mxu0 %v382
    %407 = vmatprep.subr.mxu0 0.0
    %408 = vmatpush1.msra.mxu0 %v383
    %409 = vmatprep.subr.mxu0 0.0
    %410 = vmatpush1.msra.mxu0 %v384
    %411 = vmatprep.subr.mxu0 0.0
    %412 = vmatpush1.msra.mxu0 0.0
    %413 = vmatprep.subr.mxu0 0.0
    %414 = vmatpush1.msra.mxu0 0.0
    %415 = vmatprep.subr.mxu0 0.0
    %416 = vmatpush1.msra.mxu0 0.0
    %417 = vmatprep.subr.mxu0 0.0
    %418 = vmatpush1.msra.mxu0 0.0
    %419 = vmatprep.subr.mxu0 0.0
    %420 = vmatpush1.msra.mxu0 0.0
    %421 = vmatprep.subr.mxu0 0.0
    %422 = vmatpush1.msra.mxu0 0.0
    %423 = vmatprep.subr.mxu0 0.0
    %424 = vmatpush1.msra.mxu0 0.0
    %425 = vmatprep.subr.mxu0 0.0
    %426 = vmatpush1.msra.mxu0 0.0
    %427 = vmatprep.subr.mxu0 0.0
    %428 = vmatpush1.msra.mxu0 0.0
    %429 = vmatprep.subr.mxu0 0.0
    %430 = vmatpush1.msra.mxu0 0.0
    %431 = vmatprep.subr.mxu0 0.0
    %432 = vmatpush1.msra.mxu0 0.0
    %433 = vmatprep.subr.mxu0 0.0
    %434 = vmatpush1.msra.mxu0 0.0
    %435 = vmatprep.subr.mxu0 0.0
    %436 = vmatpush1.msra.mxu0 0.0
    %437 = vmatprep.subr.mxu0 0.0
    %438 = vmatpush1.msra.mxu0 0.0
    %439 = vmatprep.subr.mxu0 0.0
    %440 = vmatpush1.msra.mxu0 0.0
    %441 = vmatprep.subr.mxu0 0.0
    %442 = vmatpush1.msra.mxu0 0.0
    %443 = vmatprep.subr.mxu0 0.0
    %444 = vmatpush1.msra.mxu0 0.0
    %445 = vmatprep.subr.mxu0 0.0
    %446 = vmatpush1.msra.mxu0 0.0
    %447 = vmatprep.subr.mxu0 0.0
    %448 = vmatpush1.msra.mxu0 0.0
    %449 = vmatprep.subr.mxu0 0.0
    %450 = vmatpush1.msra.mxu0 0.0
    %451 = vmatprep.subr.mxu0 0.0
    %452 = vmatpush1.msra.mxu0 0.0
    %453 = vmatprep.subr.mxu0 0.0
    %454 = vmatpush1.msra.mxu0 0.0
    %455 = vmatprep.subr.mxu0 0.0
    %456 = vmatpush1.msra.mxu0 0.0
    %457 = vmatprep.subr.mxu0 0.0
    %458 = vmatpush1.msra.mxu0 0.0
    %459 = vmatprep.mubr.f32.mxu0 0.0
    %460 = vmatmul.mubr.f32.gmra.mrb[0].mxu0 %v393
    %v461 = vpop.f32.mrb[0].mxu0
    %v462 = vadd.f32 %v390, %v461
    %v463 = vpop.f32.mrb[0].mxu0
    %464 = vdwg.mxu0
    %466 = vrot.lane.b32.xlu0 %v462, 16
    %v467 = vpop.permute.xlu0 %466
    %v469 = vsel %vm113, %v124, %v467
    %vm470 = vcmask 162816
    %v471 = vsel %vm470, %v469, %v202
    %vm472 = vcmask 171008
    %v473 = vsel %vm472, %v471, 0.0
    %474 = vst [vmem:[#allocation2] sm:$0xff] %v473
    // Predicated region
    $region38: #{tpu_custom_call.1} parent=1 // pred_check
      _
    $region39: #{tpu_custom_call.1} parent=1 // pred_check_branch
      %476 = sbr.rel (0) target = $region41
    $region40: #{tpu_custom_call.1} parent=1 // pred_region
      %s478 = ssub.s32 128, 128
      %479 = vsyncadd [#allocation3], %s478
      %s481 = sshll.u32 [#allocation2], 4
      %s482 = int_to_ptr.vmem [resolvable:$true] %s481
      %484 = dma.vmem_to_hbm [thread:$0]  %s482, 128, %s9, [#allocation3]
    $region41: #{tpu_custom_call.1} parent=1 // pred_fallthru
      _
    // Predicated region
    $region42: #{tpu_custom_call.1} parent=1 // pred_check
      _
    $region43: #{tpu_custom_call.1} parent=1 // pred_check_branch
      %486 = sbr.rel (0) target = $region45
    $region44: #{tpu_custom_call.1} parent=1 // pred_region
      %487 = dma.done [#allocation3], 128
    $region45: #{tpu_custom_call.1} parent=1 // pred_fallthru
      _
    %488 = vsyncpa [#allocation3], 1

</llo_original>
